<compile_context>
chip_gen: v5e
topology: v5e:2x2
jax: 0.10.0
libtpu: 0.0.40
codegen_flags: <defaults>
</compile_context>

<pallas_src>
import functools

import jax
import jax.numpy as jnp
from jax.experimental import pallas as pl
from jax.experimental.pallas import tpu as pltpu

_MIB = 1024 * 1024


def _vmem_capacity_bytes():
    """Physical VMEM of this TPU generation (v5e/v6e: 128 MiB, v7x: 64 MiB)."""
    try:
        cap = int(getattr(pltpu.get_tpu_info(), "vmem_capacity_bytes", 0))
        if cap > 0:
            return cap
    except Exception:
        pass
    return 64 * _MIB  # v7x-safe fallback


# -----------------------------------------------------------------------------
# Kernel bodies
# -----------------------------------------------------------------------------

def _rollout_kernel_vpu(x_ref, wT_ref, b_ref, o_ref, *, n_steps, C):
    """Small-C rollout on the VPU with per-channel dense (TR, 128) slabs.

      x_ref  : (C, TR, 128)          VMEM   input tile (one batch element)
      wT_ref : (C, C)                SMEM   transposed weight: pred_o = sum_i wT[o,i]*x_i
      b_ref  : (C,)                  SMEM   bias
      o_ref  : (n_steps*C, TR, 128)  VMEM   step s, channel o lands at row s*C + o
    """
    # Scalar weights/bias read once from SMEM, reused across the unrolled rollout.
    w = [[wT_ref[o, i] for i in range(C)] for o in range(C)]
    bias = [b_ref[o] for o in range(C)]

    # Note: for a partial (masked) last pixel tile the padded region of x_ref is
    # undefined; this is safe because all compute below is strictly per-pixel
    # elementwise and the output store is masked by Pallas.
    chans = [x_ref[i].astype(jnp.float32) for i in range(C)]
    for s in range(n_steps):                       # small & static -> unrolled
        new_chans = []
        for o in range(C):
            acc = chans[0] * w[o][0]
            for i in range(1, C):
                acc = acc + chans[i] * w[o][i]
            acc = acc + bias[o]
            # Per-step, per-channel dense store (full (TR,128) slab, static offset).
            o_ref[s * C + o] = acc.astype(o_ref.dtype)
            new_chans.append(acc)
        chans = new_chans                          # append_history + preproc == identity


def _rollout_kernel_mxu(x_ref, wT_ref, b_ref, o_ref, *, n_steps, C):
    """Large-C rollout on the MXU with a flat channel-major (C, TP) layout."""
    tp = x_ref.shape[-1]
    inpt = x_ref[...].astype(jnp.float32)                        # (C, TP)
    wT = wT_ref[...].astype(jnp.float32)                         # (C, C)
    # Hoist the bias broadcast out of the unrolled loop (JAX does not CSE it).
    b = jnp.broadcast_to(b_ref[...].astype(jnp.float32), (C, tp))
    # TODO(synk): at production C (~64-128) a bf16 weight/input copy (f32 state,
    # preferred_element_type=f32) would hit the native bf16 MXU path.
    for s in range(n_steps):
        pred = jnp.dot(wT, inpt, preferred_element_type=jnp.float32) + b
        o_ref[s * C:(s + 1) * C, :] = pred.astype(o_ref.dtype)   # per-step store
        inpt = pred


# -----------------------------------------------------------------------------
# Wrapper
# -----------------------------------------------------------------------------

def multi_step_forward(x_nchw, weight, bias, n_future, *, tile_pixels=None):
    """Pallas implementation of MultiStepWrapper._forward_train.

    x_nchw : (B, C, H, W) float32
    weight : (C, C)  channel-mixing matrix (in -> out), acts like a 1x1 conv
    bias   : (C,)
    returns: (B, (n_future + 1) * C, H, W) float32
    """
    B, C, H, W = x_nchw.shape
    n_steps = n_future + 1
    assert n_steps >= 1
    HW = H * W
    C_out = n_steps * C

    vmem_cap = _vmem_capacity_bytes()
    # Budget for double-buffered in/out blocks + in-kernel live slabs; leaves
    # headroom for Mosaic internal scratch below physical VMEM.
    budget = int(vmem_cap * 0.6)

    if C <= 8:
        # ---- per-channel dense-slab layout: (B, C, R, 128), VPU mixing ----
        HWp = pl.cdiv(HW, 128) * 128
        x = x_nchw.reshape(B, C, HW)               # free reshape
        if HWp != HW:
            # TODO(synk): padding costs one extra input copy; only hit when
            # H*W is not a multiple of 128.
            x = jnp.pad(x, ((0, 0), (0, 0), (0, HWp - HW)))
        R = HWp // 128
        x4 = x.reshape(B, C, R, 128)               # free reshape

        # VMEM bytes per row of 128 pixels: 2x-buffered input+output blocks
        # plus ~2C live f32 slabs inside the kernel.
        bytes_per_row = 128 * 4 * (2 * (C + C_out) + 2 * C)
        if tile_pixels is not None:
            tile_rows = max(8, (tile_pixels // 128) // 8 * 8)    # legal tile
        else:
            tile_rows = max(8, (budget // bytes_per_row) // 8 * 8)
        if tile_rows >= R:
            tile_rows = R                                        # full extent is legal
        grid_r = pl.cdiv(R, tile_rows)

        # v7x megacore: keep >= 2 grid steps so both TensorCores get work.
        if B * grid_r < 2 and R > 8:
            split = max(8, (pl.cdiv(R, 2) + 7) // 8 * 8)
            if split < R:
                tile_rows = split
                grid_r = pl.cdiv(R, tile_rows)

        needed = tile_rows * bytes_per_row + 4 * C * (C + 1)
        vmem_limit = int(min(int(vmem_cap * 0.8),
                             max(needed + 16 * _MIB, 32 * _MIB)))

        kernel = functools.partial(_rollout_kernel_vpu, n_steps=n_steps, C=C)
        out = pl.pallas_call(
            kernel,
            out_shape=jax.ShapeDtypeStruct((B, C_out, R, 128), jnp.float32),
            grid_spec=pltpu.PrefetchScalarGridSpec(
                num_scalar_prefetch=0,
                grid=(B, grid_r),
                in_specs=[
                    pl.BlockSpec((None, C, tile_rows, 128),
                                 lambda b, r: (b, 0, r, 0)),
                    pl.BlockSpec(memory_space=pltpu.MemorySpace.SMEM),
                    pl.BlockSpec(memory_space=pltpu.MemorySpace.SMEM),
                ],
                out_specs=pl.BlockSpec((None, C_out, tile_rows, 128),
                                       lambda b, r: (b, 0, r, 0)),
            ),
            compiler_params=pltpu.CompilerParams(
                dimension_semantics=("parallel", "parallel"),
                vmem_limit_bytes=vmem_limit,
            ),
        )(x4, weight.T, bias)

        out = out.reshape(B, C_out, HWp)
        if HWp != HW:
            out = out[..., :HW]
        return out.reshape(B, C_out, H, W)

    # ---- larger C: flat channel-major (B, C, HW) layout, MXU mixing ----
    x = x_nchw.reshape(B, C, HW)                   # free reshape
    wT = weight.T
    b2 = bias.reshape(C, 1)

    bytes_per_px = 4 * (2 * (C + C_out) + 2 * C)
    if tile_pixels is not None:
        tp = max(128, (tile_pixels // 128) * 128)  # round to legal lane tile
    else:
        tp = max(128, (budget // bytes_per_px) // 128 * 128)
    if tp >= HW:
        tp = HW                                    # full extent is legal
    grid_p = pl.cdiv(HW, tp)

    if B * grid_p < 2 and HW > 128:                # v7x megacore guard
        split = max(128, (pl.cdiv(HW, 2) + 127) // 128 * 128)
        if split < HW:
            tp = split
            grid_p = pl.cdiv(HW, tp)

    needed = tp * bytes_per_px + 4 * C * (C + 1)
    vmem_limit = int(min(int(vmem_cap * 0.8),
                         max(needed + 16 * _MIB, 32 * _MIB)))

    kernel = functools.partial(_rollout_kernel_mxu, n_steps=n_steps, C=C)
    out = pl.pallas_call(
        kernel,
        out_shape=jax.ShapeDtypeStruct((B, C_out, HW), jnp.float32),
        grid_spec=pltpu.PrefetchScalarGridSpec(
            num_scalar_prefetch=0,
            grid=(B, grid_p),
            in_specs=[
                pl.BlockSpec((None, C, tp), lambda b, p: (b, 0, p)),
                pl.BlockSpec((C, C), lambda b, p: (0, 0)),
                pl.BlockSpec((C, 1), lambda b, p: (0, 0)),
            ],
            out_specs=pl.BlockSpec((None, C_out, tp), lambda b, p: (b, 0, p)),
        ),
        compiler_params=pltpu.CompilerParams(
            dimension_semantics=("parallel", "parallel"),
            vmem_limit_bytes=vmem_limit,
        ),
    )(x, wT, b2)
    return out.reshape(B, C_out, H, W)


def multi_step_reference(x_nchw, weight, bias, n_future):
    """Pure-JAX reference matching the PyTorch forward-train semantics."""
    results = []
    inpt = x_nchw
    for _ in range(n_future + 1):
        pred = jnp.einsum("bchw,cd->bdhw", inpt, weight) + bias[None, :, None, None]
        results.append(pred)
        inpt = pred
    return jnp.concatenate(results, axis=1)


if __name__ == "__main__":
    # Small shapes consistent with the module: batch=2, channels=4, spatial 16x16.
    B, C, H, W = 2, 4, 16, 16
    n_future = 2  # -> 3 rollout steps, output channels = 12

    key = jax.random.PRNGKey(0)
    kx, kw, kb = jax.random.split(key, 3)

    x = jax.random.normal(kx, (B, C, H, W), dtype=jnp.float32)
    # Well-conditioned near-identity weights so the rollout stays bounded.
    weight = 0.8 * jnp.eye(C, dtype=jnp.float32) \
        + 0.05 * jax.random.normal(kw, (C, C), dtype=jnp.float32)
    bias = 0.01 * jax.random.normal(kb, (C,), dtype=jnp.float32)

    out = jax.block_until_ready(multi_step_forward(x, weight, bias, n_future))
    ref = multi_step_reference(x, weight, bias, n_future)

    assert out.shape == (B, (n_future + 1) * C, H, W), out.shape
    assert jnp.allclose(out, ref, atol=1e-5, rtol=1e-5), \
        float(jnp.max(jnp.abs(out - ref)))

    print("KERNEL_OK")
</pallas_src>

<mosaic_0001>
module attributes {stable_mosaic.version = 11 : i64} {
  func.func @_rollout_kernel_vpu(%arg0: i32, %arg1: i32, %arg2: memref<1x4x2x128xf32, #tpu.memory_space<vmem>>, %arg3: memref<4x4xf32, #tpu.memory_space<smem>>, %arg4: memref<4xf32, #tpu.memory_space<smem>>, %arg5: memref<1x12x2x128xf32, #tpu.memory_space<vmem>>) attributes {dimension_semantics = [#tpu.dimension_semantics<parallel>, #tpu.dimension_semantics<parallel>], iteration_bounds = array<i64: 2, 1>, scalar_prefetch = 0 : i64, scratch_operands = 0 : i64, tpu.core_type = #tpu.core_type<tc>, window_params = [{transform_indices = @transform_0, window_bounds = array<i64: 1, 4, 2, 128>}, {transform_indices = @transform_1, window_bounds = array<i64: 4, 4>}, {transform_indices = @transform_2, window_bounds = array<i64: 4>}, {transform_indices = @transform_3, window_bounds = array<i64: 1, 12, 2, 128>}]} {
    %c0 = arith.constant 0 : index
    %c0_0 = arith.constant 0 : index
    %0 = memref.load %arg3[%c0, %c0_0] : memref<4x4xf32, #tpu.memory_space<smem>>
    %c0_1 = arith.constant 0 : index
    %c1 = arith.constant 1 : index
    %1 = memref.load %arg3[%c0_1, %c1] : memref<4x4xf32, #tpu.memory_space<smem>>
    %c0_2 = arith.constant 0 : index
    %c2 = arith.constant 2 : index
    %2 = memref.load %arg3[%c0_2, %c2] : memref<4x4xf32, #tpu.memory_space<smem>>
    %c0_3 = arith.constant 0 : index
    %c3 = arith.constant 3 : index
    %3 = memref.load %arg3[%c0_3, %c3] : memref<4x4xf32, #tpu.memory_space<smem>>
    %c1_4 = arith.constant 1 : index
    %c0_5 = arith.constant 0 : index
    %4 = memref.load %arg3[%c1_4, %c0_5] : memref<4x4xf32, #tpu.memory_space<smem>>
    %c1_6 = arith.constant 1 : index
    %c1_7 = arith.constant 1 : index
    %5 = memref.load %arg3[%c1_6, %c1_7] : memref<4x4xf32, #tpu.memory_space<smem>>
    %c1_8 = arith.constant 1 : index
    %c2_9 = arith.constant 2 : index
    %6 = memref.load %arg3[%c1_8, %c2_9] : memref<4x4xf32, #tpu.memory_space<smem>>
    %c1_10 = arith.constant 1 : index
    %c3_11 = arith.constant 3 : index
    %7 = memref.load %arg3[%c1_10, %c3_11] : memref<4x4xf32, #tpu.memory_space<smem>>
    %c2_12 = arith.constant 2 : index
    %c0_13 = arith.constant 0 : index
    %8 = memref.load %arg3[%c2_12, %c0_13] : memref<4x4xf32, #tpu.memory_space<smem>>
    %c2_14 = arith.constant 2 : index
    %c1_15 = arith.constant 1 : index
    %9 = memref.load %arg3[%c2_14, %c1_15] : memref<4x4xf32, #tpu.memory_space<smem>>
    %c2_16 = arith.constant 2 : index
    %c2_17 = arith.constant 2 : index
    %10 = memref.load %arg3[%c2_16, %c2_17] : memref<4x4xf32, #tpu.memory_space<smem>>
    %c2_18 = arith.constant 2 : index
    %c3_19 = arith.constant 3 : index
    %11 = memref.load %arg3[%c2_18, %c3_19] : memref<4x4xf32, #tpu.memory_space<smem>>
    %c3_20 = arith.constant 3 : index
    %c0_21 = arith.constant 0 : index
    %12 = memref.load %arg3[%c3_20, %c0_21] : memref<4x4xf32, #tpu.memory_space<smem>>
    %c3_22 = arith.constant 3 : index
    %c1_23 = arith.constant 1 : index
    %13 = memref.load %arg3[%c3_22, %c1_23] : memref<4x4xf32, #tpu.memory_space<smem>>
    %c3_24 = arith.constant 3 : index
    %c2_25 = arith.constant 2 : index
    %14 = memref.load %arg3[%c3_24, %c2_25] : memref<4x4xf32, #tpu.memory_space<smem>>
    %c3_26 = arith.constant 3 : index
    %c3_27 = arith.constant 3 : index
    %15 = memref.load %arg3[%c3_26, %c3_27] : memref<4x4xf32, #tpu.memory_space<smem>>
    %c0_28 = arith.constant 0 : index
    %16 = memref.load %arg4[%c0_28] : memref<4xf32, #tpu.memory_space<smem>>
    %c1_29 = arith.constant 1 : index
    %17 = memref.load %arg4[%c1_29] : memref<4xf32, #tpu.memory_space<smem>>
    %c2_30 = arith.constant 2 : index
    %18 = memref.load %arg4[%c2_30] : memref<4xf32, #tpu.memory_space<smem>>
    %c3_31 = arith.constant 3 : index
    %19 = memref.load %arg4[%c3_31] : memref<4xf32, #tpu.memory_space<smem>>
    %c0_32 = arith.constant 0 : index
    %c0_33 = arith.constant 0 : index
    %c0_34 = arith.constant 0 : index
    %c0_35 = arith.constant 0 : index
    %20 = vector.load %arg2[%c0_32, %c0_33, %c0_34, %c0_35] : memref<1x4x2x128xf32, #tpu.memory_space<vmem>>, vector<1x1x2x128xf32>
    %21 = vector.shape_cast %20 : vector<1x1x2x128xf32> to vector<2x128xf32>
    %c0_36 = arith.constant 0 : index
    %c1_37 = arith.constant 1 : index
    %c0_38 = arith.constant 0 : index
    %c0_39 = arith.constant 0 : index
    %22 = vector.load %arg2[%c0_36, %c1_37, %c0_38, %c0_39] : memref<1x4x2x128xf32, #tpu.memory_space<vmem>>, vector<1x1x2x128xf32>
    %23 = vector.shape_cast %22 : vector<1x1x2x128xf32> to vector<2x128xf32>
    %c0_40 = arith.constant 0 : index
    %c2_41 = arith.constant 2 : index
    %c0_42 = arith.constant 0 : index
    %c0_43 = arith.constant 0 : index
    %24 = vector.load %arg2[%c0_40, %c2_41, %c0_42, %c0_43] : memref<1x4x2x128xf32, #tpu.memory_space<vmem>>, vector<1x1x2x128xf32>
    %25 = vector.shape_cast %24 : vector<1x1x2x128xf32> to vector<2x128xf32>
    %c0_44 = arith.constant 0 : index
    %c3_45 = arith.constant 3 : index
    %c0_46 = arith.constant 0 : index
    %c0_47 = arith.constant 0 : index
    %26 = vector.load %arg2[%c0_44, %c3_45, %c0_46, %c0_47] : memref<1x4x2x128xf32, #tpu.memory_space<vmem>>, vector<1x1x2x128xf32>
    %27 = vector.shape_cast %26 : vector<1x1x2x128xf32> to vector<2x128xf32>
    %28 = vector.broadcast %0 : f32 to vector<2x128xf32>
    %29 = arith.mulf %21, %28 : vector<2x128xf32>
    %30 = vector.broadcast %1 : f32 to vector<2x128xf32>
    %31 = arith.mulf %23, %30 : vector<2x128xf32>
    %32 = arith.addf %29, %31 : vector<2x128xf32>
    %33 = vector.broadcast %2 : f32 to vector<2x128xf32>
    %34 = arith.mulf %25, %33 : vector<2x128xf32>
    %35 = arith.addf %32, %34 : vector<2x128xf32>
    %36 = vector.broadcast %3 : f32 to vector<2x128xf32>
    %37 = arith.mulf %27, %36 : vector<2x128xf32>
    %38 = arith.addf %35, %37 : vector<2x128xf32>
    %39 = vector.broadcast %16 : f32 to vector<2x128xf32>
    %40 = arith.addf %38, %39 : vector<2x128xf32>
    %c0_48 = arith.constant 0 : index
    %c0_49 = arith.constant 0 : index
    %c0_50 = arith.constant 0 : index
    %c0_51 = arith.constant 0 : index
    %41 = vector.load %arg5[%c0_48, %c0_49, %c0_50, %c0_51] : memref<1x12x2x128xf32, #tpu.memory_space<vmem>>, vector<1x1x2x128xf32>
    %42 = vector.shape_cast %41 : vector<1x1x2x128xf32> to vector<2x128xf32>
    %43 = vector.shape_cast %40 : vector<2x128xf32> to vector<1x1x2x128xf32>
    tpu.vector_store %arg5[%c0_48, %c0_49, %c0_50, %c0_51], %43 {strides = array<i32>} : memref<1x12x2x128xf32, #tpu.memory_space<vmem>>, vector<1x1x2x128xf32>,
    %44 = vector.broadcast %4 : f32 to vector<2x128xf32>
    %45 = arith.mulf %21, %44 : vector<2x128xf32>
    %46 = vector.broadcast %5 : f32 to vector<2x128xf32>
    %47 = arith.mulf %23, %46 : vector<2x128xf32>
    %48 = arith.addf %45, %47 : vector<2x128xf32>
    %49 = vector.broadcast %6 : f32 to vector<2x128xf32>
    %50 = arith.mulf %25, %49 : vector<2x128xf32>
    %51 = arith.addf %48, %50 : vector<2x128xf32>
    %52 = vector.broadcast %7 : f32 to vector<2x128xf32>
    %53 = arith.mulf %27, %52 : vector<2x128xf32>
    %54 = arith.addf %51, %53 : vector<2x128xf32>
    %55 = vector.broadcast %17 : f32 to vector<2x128xf32>
    %56 = arith.addf %54, %55 : vector<2x128xf32>
    %c0_52 = arith.constant 0 : index
    %c1_53 = arith.constant 1 : index
    %c0_54 = arith.constant 0 : index
    %c0_55 = arith.constant 0 : index
    %57 = vector.load %arg5[%c0_52, %c1_53, %c0_54, %c0_55] : memref<1x12x2x128xf32, #tpu.memory_space<vmem>>, vector<1x1x2x128xf32>
    %58 = vector.shape_cast %57 : vector<1x1x2x128xf32> to vector<2x128xf32>
    %59 = vector.shape_cast %56 : vector<2x128xf32> to vector<1x1x2x128xf32>
    tpu.vector_store %arg5[%c0_52, %c1_53, %c0_54, %c0_55], %59 {strides = array<i32>} : memref<1x12x2x128xf32, #tpu.memory_space<vmem>>, vector<1x1x2x128xf32>,
    %60 = vector.broadcast %8 : f32 to vector<2x128xf32>
    %61 = arith.mulf %21, %60 : vector<2x128xf32>
    %62 = vector.broadcast %9 : f32 to vector<2x128xf32>
    %63 = arith.mulf %23, %62 : vector<2x128xf32>
    %64 = arith.addf %61, %63 : vector<2x128xf32>
    %65 = vector.broadcast %10 : f32 to vector<2x128xf32>
    %66 = arith.mulf %25, %65 : vector<2x128xf32>
    %67 = arith.addf %64, %66 : vector<2x128xf32>
    %68 = vector.broadcast %11 : f32 to vector<2x128xf32>
    %69 = arith.mulf %27, %68 : vector<2x128xf32>
    %70 = arith.addf %67, %69 : vector<2x128xf32>
    %71 = vector.broadcast %18 : f32 to vector<2x128xf32>
    %72 = arith.addf %70, %71 : vector<2x128xf32>
    %c0_56 = arith.constant 0 : index
    %c2_57 = arith.constant 2 : index
    %c0_58 = arith.constant 0 : index
    %c0_59 = arith.constant 0 : index
    %73 = vector.load %arg5[%c0_56, %c2_57, %c0_58, %c0_59] : memref<1x12x2x128xf32, #tpu.memory_space<vmem>>, vector<1x1x2x128xf32>
    %74 = vector.shape_cast %73 : vector<1x1x2x128xf32> to vector<2x128xf32>
    %75 = vector.shape_cast %72 : vector<2x128xf32> to vector<1x1x2x128xf32>
    tpu.vector_store %arg5[%c0_56, %c2_57, %c0_58, %c0_59], %75 {strides = array<i32>} : memref<1x12x2x128xf32, #tpu.memory_space<vmem>>, vector<1x1x2x128xf32>,
    %76 = vector.broadcast %12 : f32 to vector<2x128xf32>
    %77 = arith.mulf %21, %76 : vector<2x128xf32>
    %78 = vector.broadcast %13 : f32 to vector<2x128xf32>
    %79 = arith.mulf %23, %78 : vector<2x128xf32>
    %80 = arith.addf %77, %79 : vector<2x128xf32>
    %81 = vector.broadcast %14 : f32 to vector<2x128xf32>
    %82 = arith.mulf %25, %81 : vector<2x128xf32>
    %83 = arith.addf %80, %82 : vector<2x128xf32>
    %84 = vector.broadcast %15 : f32 to vector<2x128xf32>
    %85 = arith.mulf %27, %84 : vector<2x128xf32>
    %86 = arith.addf %83, %85 : vector<2x128xf32>
    %87 = vector.broadcast %19 : f32 to vector<2x128xf32>
    %88 = arith.addf %86, %87 : vector<2x128xf32>
    %c0_60 = arith.constant 0 : index
    %c3_61 = arith.constant 3 : index
    %c0_62 = arith.constant 0 : index
    %c0_63 = arith.constant 0 : index
    %89 = vector.load %arg5[%c0_60, %c3_61, %c0_62, %c0_63] : memref<1x12x2x128xf32, #tpu.memory_space<vmem>>, vector<1x1x2x128xf32>
    %90 = vector.shape_cast %89 : vector<1x1x2x128xf32> to vector<2x128xf32>
    %91 = vector.shape_cast %88 : vector<2x128xf32> to vector<1x1x2x128xf32>
    tpu.vector_store %arg5[%c0_60, %c3_61, %c0_62, %c0_63], %91 {strides = array<i32>} : memref<1x12x2x128xf32, #tpu.memory_space<vmem>>, vector<1x1x2x128xf32>,
    %92 = vector.broadcast %0 : f32 to vector<2x128xf32>
    %93 = arith.mulf %40, %92 : vector<2x128xf32>
    %94 = vector.broadcast %1 : f32 to vector<2x128xf32>
    %95 = arith.mulf %56, %94 : vector<2x128xf32>
    %96 = arith.addf %93, %95 : vector<2x128xf32>
    %97 = vector.broadcast %2 : f32 to vector<2x128xf32>
    %98 = arith.mulf %72, %97 : vector<2x128xf32>
    %99 = arith.addf %96, %98 : vector<2x128xf32>
    %100 = vector.broadcast %3 : f32 to vector<2x128xf32>
    %101 = arith.mulf %88, %100 : vector<2x128xf32>
    %102 = arith.addf %99, %101 : vector<2x128xf32>
    %103 = vector.broadcast %16 : f32 to vector<2x128xf32>
    %104 = arith.addf %102, %103 : vector<2x128xf32>
    %c0_64 = arith.constant 0 : index
    %c4 = arith.constant 4 : index
    %c0_65 = arith.constant 0 : index
    %c0_66 = arith.constant 0 : index
    %105 = vector.load %arg5[%c0_64, %c4, %c0_65, %c0_66] : memref<1x12x2x128xf32, #tpu.memory_space<vmem>>, vector<1x1x2x128xf32>
    %106 = vector.shape_cast %105 : vector<1x1x2x128xf32> to vector<2x128xf32>
    %107 = vector.shape_cast %104 : vector<2x128xf32> to vector<1x1x2x128xf32>
    tpu.vector_store %arg5[%c0_64, %c4, %c0_65, %c0_66], %107 {strides = array<i32>} : memref<1x12x2x128xf32, #tpu.memory_space<vmem>>, vector<1x1x2x128xf32>,
    %108 = vector.broadcast %4 : f32 to vector<2x128xf32>
    %109 = arith.mulf %40, %108 : vector<2x128xf32>
    %110 = vector.broadcast %5 : f32 to vector<2x128xf32>
    %111 = arith.mulf %56, %110 : vector<2x128xf32>
    %112 = arith.addf %109, %111 : vector<2x128xf32>
    %113 = vector.broadcast %6 : f32 to vector<2x128xf32>
    %114 = arith.mulf %72, %113 : vector<2x128xf32>
    %115 = arith.addf %112, %114 : vector<2x128xf32>
    %116 = vector.broadcast %7 : f32 to vector<2x128xf32>
    %117 = arith.mulf %88, %116 : vector<2x128xf32>
    %118 = arith.addf %115, %117 : vector<2x128xf32>
    %119 = vector.broadcast %17 : f32 to vector<2x128xf32>
    %120 = arith.addf %118, %119 : vector<2x128xf32>
    %c0_67 = arith.constant 0 : index
    %c5 = arith.constant 5 : index
    %c0_68 = arith.constant 0 : index
    %c0_69 = arith.constant 0 : index
    %121 = vector.load %arg5[%c0_67, %c5, %c0_68, %c0_69] : memref<1x12x2x128xf32, #tpu.memory_space<vmem>>, vector<1x1x2x128xf32>
    %122 = vector.shape_cast %121 : vector<1x1x2x128xf32> to vector<2x128xf32>
    %123 = vector.shape_cast %120 : vector<2x128xf32> to vector<1x1x2x128xf32>
    tpu.vector_store %arg5[%c0_67, %c5, %c0_68, %c0_69], %123 {strides = array<i32>} : memref<1x12x2x128xf32, #tpu.memory_space<vmem>>, vector<1x1x2x128xf32>,
    %124 = vector.broadcast %8 : f32 to vector<2x128xf32>
    %125 = arith.mulf %40, %124 : vector<2x128xf32>
    %126 = vector.broadcast %9 : f32 to vector<2x128xf32>
    %127 = arith.mulf %56, %126 : vector<2x128xf32>
    %128 = arith.addf %125, %127 : vector<2x128xf32>
    %129 = vector.broadcast %10 : f32 to vector<2x128xf32>
    %130 = arith.mulf %72, %129 : vector<2x128xf32>
    %131 = arith.addf %128, %130 : vector<2x128xf32>
    %132 = vector.broadcast %11 : f32 to vector<2x128xf32>
    %133 = arith.mulf %88, %132 : vector<2x128xf32>
    %134 = arith.addf %131, %133 : vector<2x128xf32>
    %135 = vector.broadcast %18 : f32 to vector<2x128xf32>
    %136 = arith.addf %134, %135 : vector<2x128xf32>
    %c0_70 = arith.constant 0 : index
    %c6 = arith.constant 6 : index
    %c0_71 = arith.constant 0 : index
    %c0_72 = arith.constant 0 : index
    %137 = vector.load %arg5[%c0_70, %c6, %c0_71, %c0_72] : memref<1x12x2x128xf32, #tpu.memory_space<vmem>>, vector<1x1x2x128xf32>
    %138 = vector.shape_cast %137 : vector<1x1x2x128xf32> to vector<2x128xf32>
    %139 = vector.shape_cast %136 : vector<2x128xf32> to vector<1x1x2x128xf32>
    tpu.vector_store %arg5[%c0_70, %c6, %c0_71, %c0_72], %139 {strides = array<i32>} : memref<1x12x2x128xf32, #tpu.memory_space<vmem>>, vector<1x1x2x128xf32>,
    %140 = vector.broadcast %12 : f32 to vector<2x128xf32>
    %141 = arith.mulf %40, %140 : vector<2x128xf32>
    %142 = vector.broadcast %13 : f32 to vector<2x128xf32>
    %143 = arith.mulf %56, %142 : vector<2x128xf32>
    %144 = arith.addf %141, %143 : vector<2x128xf32>
    %145 = vector.broadcast %14 : f32 to vector<2x128xf32>
    %146 = arith.mulf %72, %145 : vector<2x128xf32>
    %147 = arith.addf %144, %146 : vector<2x128xf32>
    %148 = vector.broadcast %15 : f32 to vector<2x128xf32>
    %149 = arith.mulf %88, %148 : vector<2x128xf32>
    %150 = arith.addf %147, %149 : vector<2x128xf32>
    %151 = vector.broadcast %19 : f32 to vector<2x128xf32>
    %152 = arith.addf %150, %151 : vector<2x128xf32>
    %c0_73 = arith.constant 0 : index
    %c7 = arith.constant 7 : index
    %c0_74 = arith.constant 0 : index
    %c0_75 = arith.constant 0 : index
    %153 = vector.load %arg5[%c0_73, %c7, %c0_74, %c0_75] : memref<1x12x2x128xf32, #tpu.memory_space<vmem>>, vector<1x1x2x128xf32>
    %154 = vector.shape_cast %153 : vector<1x1x2x128xf32> to vector<2x128xf32>
    %155 = vector.shape_cast %152 : vector<2x128xf32> to vector<1x1x2x128xf32>
    tpu.vector_store %arg5[%c0_73, %c7, %c0_74, %c0_75], %155 {strides = array<i32>} : memref<1x12x2x128xf32, #tpu.memory_space<vmem>>, vector<1x1x2x128xf32>,
    %156 = vector.broadcast %0 : f32 to vector<2x128xf32>
    %157 = arith.mulf %104, %156 : vector<2x128xf32>
    %158 = vector.broadcast %1 : f32 to vector<2x128xf32>
    %159 = arith.mulf %120, %158 : vector<2x128xf32>
    %160 = arith.addf %157, %159 : vector<2x128xf32>
    %161 = vector.broadcast %2 : f32 to vector<2x128xf32>
    %162 = arith.mulf %136, %161 : vector<2x128xf32>
    %163 = arith.addf %160, %162 : vector<2x128xf32>
    %164 = vector.broadcast %3 : f32 to vector<2x128xf32>
    %165 = arith.mulf %152, %164 : vector<2x128xf32>
    %166 = arith.addf %163, %165 : vector<2x128xf32>
    %167 = vector.broadcast %16 : f32 to vector<2x128xf32>
    %168 = arith.addf %166, %167 : vector<2x128xf32>
    %c0_76 = arith.constant 0 : index
    %c8 = arith.constant 8 : index
    %c0_77 = arith.constant 0 : index
    %c0_78 = arith.constant 0 : index
    %169 = vector.load %arg5[%c0_76, %c8, %c0_77, %c0_78] : memref<1x12x2x128xf32, #tpu.memory_space<vmem>>, vector<1x1x2x128xf32>
    %170 = vector.shape_cast %169 : vector<1x1x2x128xf32> to vector<2x128xf32>
    %171 = vector.shape_cast %168 : vector<2x128xf32> to vector<1x1x2x128xf32>
    tpu.vector_store %arg5[%c0_76, %c8, %c0_77, %c0_78], %171 {strides = array<i32>} : memref<1x12x2x128xf32, #tpu.memory_space<vmem>>, vector<1x1x2x128xf32>,
    %172 = vector.broadcast %4 : f32 to vector<2x128xf32>
    %173 = arith.mulf %104, %172 : vector<2x128xf32>
    %174 = vector.broadcast %5 : f32 to vector<2x128xf32>
    %175 = arith.mulf %120, %174 : vector<2x128xf32>
    %176 = arith.addf %173, %175 : vector<2x128xf32>
    %177 = vector.broadcast %6 : f32 to vector<2x128xf32>
    %178 = arith.mulf %136, %177 : vector<2x128xf32>
    %179 = arith.addf %176, %178 : vector<2x128xf32>
    %180 = vector.broadcast %7 : f32 to vector<2x128xf32>
    %181 = arith.mulf %152, %180 : vector<2x128xf32>
    %182 = arith.addf %179, %181 : vector<2x128xf32>
    %183 = vector.broadcast %17 : f32 to vector<2x128xf32>
    %184 = arith.addf %182, %183 : vector<2x128xf32>
    %c0_79 = arith.constant 0 : index
    %c9 = arith.constant 9 : index
    %c0_80 = arith.constant 0 : index
    %c0_81 = arith.constant 0 : index
    %185 = vector.load %arg5[%c0_79, %c9, %c0_80, %c0_81] : memref<1x12x2x128xf32, #tpu.memory_space<vmem>>, vector<1x1x2x128xf32>
    %186 = vector.shape_cast %185 : vector<1x1x2x128xf32> to vector<2x128xf32>
    %187 = vector.shape_cast %184 : vector<2x128xf32> to vector<1x1x2x128xf32>
    tpu.vector_store %arg5[%c0_79, %c9, %c0_80, %c0_81], %187 {strides = array<i32>} : memref<1x12x2x128xf32, #tpu.memory_space<vmem>>, vector<1x1x2x128xf32>,
    %188 = vector.broadcast %8 : f32 to vector<2x128xf32>
    %189 = arith.mulf %104, %188 : vector<2x128xf32>
    %190 = vector.broadcast %9 : f32 to vector<2x128xf32>
    %191 = arith.mulf %120, %190 : vector<2x128xf32>
    %192 = arith.addf %189, %191 : vector<2x128xf32>
    %193 = vector.broadcast %10 : f32 to vector<2x128xf32>
    %194 = arith.mulf %136, %193 : vector<2x128xf32>
    %195 = arith.addf %192, %194 : vector<2x128xf32>
    %196 = vector.broadcast %11 : f32 to vector<2x128xf32>
    %197 = arith.mulf %152, %196 : vector<2x128xf32>
    %198 = arith.addf %195, %197 : vector<2x128xf32>
    %199 = vector.broadcast %18 : f32 to vector<2x128xf32>
    %200 = arith.addf %198, %199 : vector<2x128xf32>
    %c0_82 = arith.constant 0 : index
    %c10 = arith.constant 10 : index
    %c0_83 = arith.constant 0 : index
    %c0_84 = arith.constant 0 : index
    %201 = vector.load %arg5[%c0_82, %c10, %c0_83, %c0_84] : memref<1x12x2x128xf32, #tpu.memory_space<vmem>>, vector<1x1x2x128xf32>
    %202 = vector.shape_cast %201 : vector<1x1x2x128xf32> to vector<2x128xf32>
    %203 = vector.shape_cast %200 : vector<2x128xf32> to vector<1x1x2x128xf32>
    tpu.vector_store %arg5[%c0_82, %c10, %c0_83, %c0_84], %203 {strides = array<i32>} : memref<1x12x2x128xf32, #tpu.memory_space<vmem>>, vector<1x1x2x128xf32>,
    %204 = vector.broadcast %12 : f32 to vector<2x128xf32>
    %205 = arith.mulf %104, %204 : vector<2x128xf32>
    %206 = vector.broadcast %13 : f32 to vector<2x128xf32>
    %207 = arith.mulf %120, %206 : vector<2x128xf32>
    %208 = arith.addf %205, %207 : vector<2x128xf32>
    %209 = vector.broadcast %14 : f32 to vector<2x128xf32>
    %210 = arith.mulf %136, %209 : vector<2x128xf32>
    %211 = arith.addf %208, %210 : vector<2x128xf32>
    %212 = vector.broadcast %15 : f32 to vector<2x128xf32>
    %213 = arith.mulf %152, %212 : vector<2x128xf32>
    %214 = arith.addf %211, %213 : vector<2x128xf32>
    %215 = vector.broadcast %19 : f32 to vector<2x128xf32>
    %216 = arith.addf %214, %215 : vector<2x128xf32>
    %c0_85 = arith.constant 0 : index
    %c11 = arith.constant 11 : index
    %c0_86 = arith.constant 0 : index
    %c0_87 = arith.constant 0 : index
    %217 = vector.load %arg5[%c0_85, %c11, %c0_86, %c0_87] : memref<1x12x2x128xf32, #tpu.memory_space<vmem>>, vector<1x1x2x128xf32>
    %218 = vector.shape_cast %217 : vector<1x1x2x128xf32> to vector<2x128xf32>
    %219 = vector.shape_cast %216 : vector<2x128xf32> to vector<1x1x2x128xf32>
    tpu.vector_store %arg5[%c0_85, %c11, %c0_86, %c0_87], %219 {strides = array<i32>} : memref<1x12x2x128xf32, #tpu.memory_space<vmem>>, vector<1x1x2x128xf32>,
    return
  }
  func.func @transform_0(%arg0: i32, %arg1: i32) -> (i32, i32, i32, i32) {
    %c0_i32 = arith.constant 0 : i32
    %c0_i32_0 = arith.constant 0 : i32
    %c0_i32_1 = arith.constant 0 : i32
    return %arg0, %c0_i32, %arg1, %c0_i32_0 : i32, i32, i32, i32
  }
  func.func @transform_1(%arg0: i32, %arg1: i32) -> (i32, i32) {
    %c0_i32 = arith.constant 0 : i32
    %c0_i32_0 = arith.constant 0 : i32
    %c0_i32_1 = arith.constant 0 : i32
    return %c0_i32, %c0_i32_0 : i32, i32
  }
  func.func @transform_2(%arg0: i32, %arg1: i32) -> i32 {
    %c0_i32 = arith.constant 0 : i32
    %c0_i32_0 = arith.constant 0 : i32
    return %c0_i32 : i32
  }
  func.func @transform_3(%arg0: i32, %arg1: i32) -> (i32, i32, i32, i32) {
    %c0_i32 = arith.constant 0 : i32
    %c0_i32_0 = arith.constant 0 : i32
    %c0_i32_1 = arith.constant 0 : i32
    return %arg0, %c0_i32, %arg1, %c0_i32_0 : i32, i32, i32, i32
  }
}

</mosaic_0001>

<llo_original>
// kernel: tpu_custom_call.1
$region0: #{tpu_custom_call.1}
  #allocation0 [shape = 'u32[]', space=smem, size = 0x4, offset = 0x4, fixed_abs, tag = 'smem constant byte address 0x4 - core index']
  #allocation1 [shape = 'u32[72,128]{1,0:T(1,128)}', space=vmem, size = 0x9000, scoped, tag = 'internal scratch']
  %s0 = inlined_call_operand.hbm [shape: f32[2,4,2,128], index: 0, kind: input, shape index: {}]
  %s1 = inlined_call_operand.hbm [shape: f32[4,4], index: 1, kind: input, shape index: {}]
  %s2 = inlined_call_operand.vmem [shape: f32[4], index: 2, kind: input, shape index: {}]
  %s3 = inlined_call_operand.hbm [shape: f32[2,12,2,128], index: 3, kind: output, shape index: {}]
  %s4 = sld [smem:[#allocation0]]
  $region57: #{tpu_custom_call.1} parent=0
    _
  %s6 = ssub.s32 1, %s4
  %s7 = scalar_select 0, %s6, %s4
  $region1: #{tpu_custom_call.1} parent=0
    #allocation2 [shape = 'u8[8192]{0}', space=vmem, size = 0x2000, scoped, tag = 'input window, operand 0']
    #allocation3 [shape = 's32[2]{0}', space=sflag, size = 0x8, scoped, tag = 'scoped memory for tpu_custom_call.1']
    #allocation4 [shape = 's32[2]{0}', space=sflag, size = 0x8, scoped, tag = 'scoped memory for tpu_custom_call.1']
    #allocation5 [shape = 's32[2]{0}', space=sflag, size = 0x8, scoped, tag = 'scoped memory for tpu_custom_call.1']
    #allocation6 [shape = 's32[2]{0}', space=sflag, size = 0x8, scoped, tag = 'scoped memory for tpu_custom_call.1']
    #allocation7 [shape = 'u8[2048]{0}', space=smem, size = 0x800, scoped, tag = 'input window, operand 1, single buffered']
    #allocation8 [shape = 'u8[512]{0}', space=smem, size = 0x200, scoped, tag = 'input window, operand 2, single buffered']
    #allocation9 [shape = 'u8[24576]{0}', space=vmem, size = 0x6000, scoped, tag = 'output window, operand 0']
    %8 = vsyncpa [#allocation3], 0
    %s9 = scalar_lea.sflag [#allocation3], 1
    %10 = vsyncpa %s9, 0
    %11 = vsyncpa [#allocation5], 0
    %12 = vsyncpa [#allocation6], 0
    %13 = vsyncpa [#allocation4], 0
    %s14 = scalar_lea.sflag [#allocation4], 1
    %15 = vsyncpa %s14, 0
    loop: start=0, step=1, limit=4
    $region2: #{tpu_custom_call.1} parent=1 // loop_pre_header
      _
    $region3: #{tpu_custom_call.1} parent=1 // loop_header
      %s17 = sphi 0, %s21
      %p18 = scmp.ge.s32.totalorder %s17, 4
      %s24 = sphi 0, %s36
      %s25 = sphi 0, %s32
      %s26 = sphi 0, %s24
      %s27 = sphi 0, %s25
      %s28 = sphi 0, %s26
      %s29 = sphi 0, %s27
      %s41 = sphi 0, %s43
      %s44 = sphi 0, %s41
      %s45 = sphi 0, %s44
      %s61 = sphi 0, %s45
      %s65 = sphi 0, %s65
      %s67 = sphi 0, %s65
      %s68 = sphi 0, %s67
      %s82 = sphi 0, %s68
      %s86 = sphi 0, %s86
      %s88 = sphi 0, %s86
      %s89 = sphi 0, %s88
      %s103 = sphi 0, %s89
      %s111 = sphi 0, %s113
      %s114 = sphi 0, %s111
      %s115 = sphi 0, %s114
      %s131 = sphi 0, %s115
    $region4: #{tpu_custom_call.1} parent=1 // loop_header_branch
      %20 = sbr.rel (%p18) target = $region8
    $region5: #{tpu_custom_call.1} parent=1 // loop_body
      %s22 = ssub.s32 %s17, 1
      %s23 = ssub.s32 %s17, 2
      %s30 = sadd.s32 1, %s25
      %p31 = scmp.ge.s32.totalorder %s30, 1
      %s32 = scalar_select %p31, 0, %s30
      %s33 = sadd.s32 1, %s24
      %s34 = scalar_select %p31, %s33, %s24
      %p35 = scmp.ge.s32.totalorder %s34, 2
      %s36 = scalar_select %p35, 0, %s34
      %s37 = ssub.s32 %s24, %s36
      %s38 = ssub.s32 %s25, %s32
      %s39 = sor.u32 %s37, %s38
      %p40 = scmp.eq.s32.totalorder %s39, 0
      %s42 = sadd.s32 %s41, 1
      %s43 = scalar_select %p40, %s41, %s42
      %p46 = pneg %p40
      %p47 = scmp.eq.s32.totalorder %s17, 1
      %p48 = por %p46, %p47
      %p49 = scmp.ne.s32.totalorder %s41, %s44
      %p50 = scmp.eq.s32.totalorder %s17, 0
      %p51 = por %p49, %p50
      %p52 = scmp.ne.s32.totalorder %s41, %s44
      %p53 = scmp.eq.s32.totalorder %s22, 1
      %p54 = por %p52, %p53
      %p55 = scmp.ne.s32.totalorder %s44, %s45
      %p56 = scmp.eq.s32.totalorder %s22, 0
      %p57 = por %p55, %p56
      %p58 = scmp.ne.s32.totalorder %s44, %s45
      %p59 = scmp.eq.s32.totalorder %s23, 1
      %p60 = por %p58, %p59
      %p62 = scmp.ne.s32.totalorder %s45, %s61
      %p63 = scmp.eq.s32.totalorder %s23, 0
      %p64 = por %p62, %p63
      %s66 = sadd.s32 %s65, 1
      %p69 = scmp.eq.s32.totalorder %s17, 1
      %p70 = scmp.ne.s32.totalorder %s65, %s67
      %p71 = scmp.eq.s32.totalorder %s17, 0
      %p72 = por %p70, %p71
      %p73 = scmp.ne.s32.totalorder %s65, %s67
      %p74 = scmp.eq.s32.totalorder %s22, 1
      %p75 = por %p73, %p74
      %p76 = scmp.ne.s32.totalorder %s67, %s68
      %p77 = scmp.eq.s32.totalorder %s22, 0
      %p78 = por %p76, %p77
      %p79 = scmp.ne.s32.totalorder %s67, %s68
      %p80 = scmp.eq.s32.totalorder %s23, 1
      %p81 = por %p79, %p80
      %p83 = scmp.ne.s32.totalorder %s68, %s82
      %p84 = scmp.eq.s32.totalorder %s23, 0
      %p85 = por %p83, %p84
      %s87 = sadd.s32 %s86, 1
      %p90 = scmp.eq.s32.totalorder %s17, 1
      %p91 = scmp.ne.s32.totalorder %s86, %s88
      %p92 = scmp.eq.s32.totalorder %s17, 0
      %p93 = por %p91, %p92
      %p94 = scmp.ne.s32.totalorder %s86, %s88
      %p95 = scmp.eq.s32.totalorder %s22, 1
      %p96 = por %p94, %p95
      %p97 = scmp.ne.s32.totalorder %s88, %s89
      %p98 = scmp.eq.s32.totalorder %s22, 0
      %p99 = por %p97, %p98
      %p100 = scmp.ne.s32.totalorder %s88, %s89
      %p101 = scmp.eq.s32.totalorder %s23, 1
      %p102 = por %p100, %p101
      %p104 = scmp.ne.s32.totalorder %s89, %s103
      %p105 = scmp.eq.s32.totalorder %s23, 0
      %p106 = por %p104, %p105
      %s107 = ssub.s32 %s24, %s36
      %s108 = ssub.s32 %s25, %s32
      %s109 = sor.u32 %s107, %s108
      %p110 = scmp.eq.s32.totalorder %s109, 0
      %s112 = sadd.s32 %s111, 1
      %s113 = scalar_select %p110, %s111, %s112
      %p116 = pneg %p110
      %p117 = scmp.eq.s32.totalorder %s17, 1
      %p118 = por %p116, %p117
      %p119 = scmp.ne.s32.totalorder %s111, %s114
      %p120 = scmp.eq.s32.totalorder %s17, 0
      %p121 = por %p119, %p120
      %p122 = scmp.ne.s32.totalorder %s111, %s114
      %p123 = scmp.eq.s32.totalorder %s22, 1
      %p124 = por %p122, %p123
      %p125 = scmp.ne.s32.totalorder %s114, %s115
      %p126 = scmp.eq.s32.totalorder %s22, 0
      %p127 = por %p125, %p126
      %p128 = scmp.ne.s32.totalorder %s114, %s115
      %p129 = scmp.eq.s32.totalorder %s23, 1
      %p130 = por %p128, %p129
      %p132 = scmp.ne.s32.totalorder %s115, %s131
      %p133 = scmp.eq.s32.totalorder %s23, 0
      %p134 = por %p132, %p133
      %p135 = scmp.le.s32.totalorder 1, %s17
      %p136 = scmp.lt.s32.totalorder %s17, 3
      %p137 = pnand %p135, %p136
      %p138 = pneg %p137
      // Predicated region
      $region9: #{tpu_custom_call.1} parent=5 // pred_check
        _
      $region10: #{tpu_custom_call.1} parent=5 // pred_check_branch
        %140 = sbr.rel (%p137) target = $region12
      $region11: #{tpu_custom_call.1} parent=5 // pred_region
        %s141 = ssub.s32 %s17, 1
        // Predicated region
        $region13: #{tpu_custom_call.1} parent=11 // pred_check
          %p142 = pneg %p78
        $region14: #{tpu_custom_call.1} parent=11 // pred_check_branch
          %144 = sbr.rel (%p142) target = $region16
        $region15: #{tpu_custom_call.1} parent=11 // pred_region
          %146 = vsyncadd [#allocation5], 0
          %s148 = sshll.u32 %s1, 4
          %s149 = int_to_ptr.hbm [resolvable:$true] %s148
          %151 = dma.hbm_to_smem %s149, 64, [#allocation7], [#allocation5]
        $region16: #{tpu_custom_call.1} parent=11 // pred_fallthru
          _
        // Predicated region
        $region17: #{tpu_custom_call.1} parent=11 // pred_check
          %p152 = pneg %p99
        $region18: #{tpu_custom_call.1} parent=11 // pred_check_branch
          %154 = sbr.rel (%p152) target = $region20
        $region19: #{tpu_custom_call.1} parent=11 // pred_region
          %156 = vsyncadd [#allocation6], 0
          %s158 = sshll.u32 %s2, 4
          %s159 = int_to_ptr.vmem [resolvable:$true] %s158
          %161 = dma.vmem_to_smem %s159, 16, [#allocation8], [#allocation6]
        $region20: #{tpu_custom_call.1} parent=11 // pred_fallthru
          _
      $region12: #{tpu_custom_call.1} parent=5 // pred_fallthru
        _
      %p162 = scmp.lt.s32.totalorder %s17, 2
      // Predicated region
      $region21: #{tpu_custom_call.1} parent=5 // pred_check
        %p163 = pneg %p162
      $region22: #{tpu_custom_call.1} parent=5 // pred_check_branch
        %165 = sbr.rel (%p163) target = $region24
      $region23: #{tpu_custom_call.1} parent=5 // pred_region
        // Predicated region
        $region25: #{tpu_custom_call.1} parent=23 // pred_check
          %p166 = pneg %p51
        $region26: #{tpu_custom_call.1} parent=23 // pred_check_branch
          %168 = sbr.rel (%p166) target = $region28
        $region27: #{tpu_custom_call.1} parent=23 // pred_region
          %s169 = sand.u32 %s41, 1
          %s170 = scalar_lea.sflag [#allocation3], %s169
          %s171 = sand.u32 %s41, 1
          %s172 = smul.addr %s171, 8
          %s173 = scalar_lea.vmem [#allocation2], %s172
          %175 = vsyncadd %s170, 0
          %s176 = smul.addr %s24, 4
          %s177 = sadd.s32 %s25, %s176
          %s178 = smul.addr %s177, 2
          %s179 = scalar_lea.hbm %s0, %s178
          %s180 = sshll.u32 %s179, 4
          %s181 = int_to_ptr.hbm [resolvable:$true] %s180
          %s182 = sshll.u32 %s173, 4
          %s183 = int_to_ptr.vmem [resolvable:$true] %s182
          %188 = dma.hbm_to_vmem [thread:$0]  %s181, 128, %s183, %s170, 32, 32, 2
        $region28: #{tpu_custom_call.1} parent=23 // pred_fallthru
          _
      $region24: #{tpu_custom_call.1} parent=5 // pred_fallthru
        _
      %p189 = scmp.le.s32.totalorder 1, %s17
      %p190 = scmp.lt.s32.totalorder %s17, 3
      %p191 = pnand %p189, %p190
      %p192 = pneg %p191
      // Predicated region
      $region29: #{tpu_custom_call.1} parent=5 // pred_check
        _
      $region30: #{tpu_custom_call.1} parent=5 // pred_check_branch
        %194 = sbr.rel (%p191) target = $region32
      $region31: #{tpu_custom_call.1} parent=5 // pred_region
        %s195 = ssub.s32 %s17, 1
        %s196 = sand.u32 %s44, 1
        %s197 = scalar_lea.sflag [#allocation3], %s196
        %s198 = sand.u32 %s44, 1
        %s199 = smul.addr %s198, 8
        %s200 = scalar_lea.vmem [#allocation2], %s199
        // Predicated region
        $region33: #{tpu_custom_call.1} parent=31 // pred_check
          %p201 = pneg %p57
        $region34: #{tpu_custom_call.1} parent=31 // pred_check_branch
          %203 = sbr.rel (%p201) target = $region36
        $region35: #{tpu_custom_call.1} parent=31 // pred_region
          %205 = dma.done %s197, 128
        $region36: #{tpu_custom_call.1} parent=31 // pred_fallthru
          _
        // Predicated region
        $region37: #{tpu_custom_call.1} parent=31 // pred_check
          %p206 = pneg %p78
        $region38: #{tpu_custom_call.1} parent=31 // pred_check_branch
          %208 = sbr.rel (%p206) target = $region40
        $region39: #{tpu_custom_call.1} parent=31 // pred_region
          %210 = dma.done [#allocation5], 64
        $region40: #{tpu_custom_call.1} parent=31 // pred_fallthru
          _
        // Predicated region
        $region41: #{tpu_custom_call.1} parent=31 // pred_check
          %p211 = pneg %p99
        $region42: #{tpu_custom_call.1} parent=31 // pred_check_branch
          %213 = sbr.rel (%p211) target = $region44
        $region43: #{tpu_custom_call.1} parent=31 // pred_region
          %215 = dma.done [#allocation6], 16
        $region44: #{tpu_custom_call.1} parent=31 // pred_fallthru
          _
        %216 = sfence
        %s217 = sand.u32 %s44, 1
        %s218 = scalar_lea.sflag [#allocation3], %s217
        %s219 = sand.u32 %s44, 1
        %s220 = smul.addr %s219, 8
        %s221 = scalar_lea.vmem [#allocation2], %s220
        %p222 = pneg %p57
        %p223 = pneg %p54
        %p224 = pneg %p78
        %p225 = pneg %p75
        %p226 = pneg %p99
        %p227 = pneg %p96
        %p228 = pneg %p127
        %p229 = pneg %p124
        %s230 = sand.u32 %s114, 1
        %s231 = scalar_lea.sflag [#allocation4], %s230
        %s232 = sand.u32 %s114, 1
        %s233 = smul.addr %s232, 24
        %s234 = scalar_lea.vmem [#allocation9], %s233
        %s235 = sld [smem:[#allocation7]]
        %s236 = sld [smem:[#allocation7 + $0x1]]
        %s237 = sld [smem:[#allocation7 + $0x2]]
        %s238 = sld [smem:[#allocation7 + $0x3]]
        %s239 = sld [smem:[#allocation7 + $0x80]]
        %s240 = sld [smem:[#allocation7 + $0x81]]
        %s241 = sld [smem:[#allocation7 + $0x82]]
        %s242 = sld [smem:[#allocation7 + $0x83]]
        %s243 = sld [smem:[#allocation7 + $0x100]]
        %s244 = sld [smem:[#allocation7 + $0x101]]
        %s245 = sld [smem:[#allocation7 + $0x102]]
        %s246 = sld [smem:[#allocation7 + $0x103]]
        %s247 = sld [smem:[#allocation7 + $0x180]]
        %s248 = sld [smem:[#allocation7 + $0x181]]
        %s249 = sld [smem:[#allocation7 + $0x182]]
        %s250 = sld [smem:[#allocation7 + $0x183]]
        %s251 = sld [smem:[#allocation8]]
        %s252 = sld [smem:[#allocation8 + $0x1]]
        %s253 = sld [smem:[#allocation8 + $0x2]]
        %s254 = sld [smem:[#allocation8 + $0x3]]
        %v255 = vld [vmem:[%s200] sm:$0x3]
        %s256 = scalar_lea.vmem %s200, 2 [#allocation2]
        %v257 = vld [vmem:[%s256] sm:$0x3]
        %s258 = scalar_lea.vmem %s200, 4 [#allocation2]
        %v259 = vld [vmem:[%s258] sm:$0x3]
        %s260 = scalar_lea.vmem %s200, 6 [#allocation2]
        %v261 = vld [vmem:[%s260] sm:$0x3]
        %v262 = vstv %s235
        %v263 = vmul.f32 %v255, %v262
        %v264 = vstv %s236
        %v265 = vmul.f32 %v257, %v264
        %v266 = vadd.f32 %v263, %v265
        %v267 = vstv %s237
        %v268 = vmul.f32 %v259, %v267
        %v269 = vadd.f32 %v266, %v268
        %v270 = vstv %s238
        %v271 = vmul.f32 %v261, %v270
        %v272 = vadd.f32 %v269, %v271
        %v273 = vstv %s251
        %v274 = vadd.f32 %v272, %v273
        %275 = vst [vmem:[%s234] sm:$0x3] %v274
        %v276 = vstv %s239
        %v277 = vmul.f32 %v255, %v276
        %v278 = vstv %s240
        %v279 = vmul.f32 %v257, %v278
        %v280 = vadd.f32 %v277, %v279
        %v281 = vstv %s241
        %v282 = vmul.f32 %v259, %v281
        %v283 = vadd.f32 %v280, %v282
        %v284 = vstv %s242
        %v285 = vmul.f32 %v261, %v284
        %v286 = vadd.f32 %v283, %v285
        %v287 = vstv %s252
        %v288 = vadd.f32 %v286, %v287
        %s289 = scalar_lea.vmem %s234, 2 [#allocation9]
        %290 = vst [vmem:[%s289] sm:$0x3] %v288
        %v291 = vstv %s243
        %v292 = vmul.f32 %v255, %v291
        %v293 = vstv %s244
        %v294 = vmul.f32 %v257, %v293
        %v295 = vadd.f32 %v292, %v294
        %v296 = vstv %s245
        %v297 = vmul.f32 %v259, %v296
        %v298 = vadd.f32 %v295, %v297
        %v299 = vstv %s246
        %v300 = vmul.f32 %v261, %v299
        %v301 = vadd.f32 %v298, %v300
        %v302 = vstv %s253
        %v303 = vadd.f32 %v301, %v302
        %s304 = scalar_lea.vmem %s234, 4 [#allocation9]
        %305 = vst [vmem:[%s304] sm:$0x3] %v303
        %v306 = vstv %s247
        %v307 = vmul.f32 %v255, %v306
        %v308 = vstv %s248
        %v309 = vmul.f32 %v257, %v308
        %v310 = vadd.f32 %v307, %v309
        %v311 = vstv %s249
        %v312 = vmul.f32 %v259, %v311
        %v313 = vadd.f32 %v310, %v312
        %v314 = vstv %s250
        %v315 = vmul.f32 %v261, %v314
        %v316 = vadd.f32 %v313, %v315
        %v317 = vstv %s254
        %v318 = vadd.f32 %v316, %v317
        %s319 = scalar_lea.vmem %s234, 6 [#allocation9]
        %320 = vst [vmem:[%s319] sm:$0x3] %v318
        %v321 = vmul.f32 %v274, %v262
        %v322 = vmul.f32 %v288, %v264
        %v323 = vadd.f32 %v321, %v322
        %v324 = vmul.f32 %v303, %v267
        %v325 = vadd.f32 %v323, %v324
        %v326 = vmul.f32 %v318, %v270
        %v327 = vadd.f32 %v325, %v326
        %v328 = vadd.f32 %v327, %v273
        %s329 = scalar_lea.vmem %s234, 8 [#allocation9]
        %330 = vst [vmem:[%s329] sm:$0x3] %v328
        %v331 = vmul.f32 %v274, %v276
        %v332 = vmul.f32 %v288, %v278
        %v333 = vadd.f32 %v331, %v332
        %v334 = vmul.f32 %v303, %v281
        %v335 = vadd.f32 %v333, %v334
        %v336 = vmul.f32 %v318, %v284
        %v337 = vadd.f32 %v335, %v336
        %v338 = vadd.f32 %v337, %v287
        %s339 = scalar_lea.vmem %s234, 10 [#allocation9]
        %340 = vst [vmem:[%s339] sm:$0x3] %v338
        %v341 = vmul.f32 %v274, %v291
        %v342 = vmul.f32 %v288, %v293
        %v343 = vadd.f32 %v341, %v342
        %v344 = vmul.f32 %v303, %v296
        %v345 = vadd.f32 %v343, %v344
        %v346 = vmul.f32 %v318, %v299
        %v347 = vadd.f32 %v345, %v346
        %v348 = vadd.f32 %v347, %v302
        %s349 = scalar_lea.vmem %s234, 12 [#allocation9]
        %350 = vst [vmem:[%s349] sm:$0x3] %v348
        %v351 = vmul.f32 %v274, %v306
        %v352 = vmul.f32 %v288, %v308
        %v353 = vadd.f32 %v351, %v352
        %v354 = vmul.f32 %v303, %v311
        %v355 = vadd.f32 %v353, %v354
        %v356 = vmul.f32 %v318, %v314
        %v357 = vadd.f32 %v355, %v356
        %v358 = vadd.f32 %v357, %v317
        %s359 = scalar_lea.vmem %s234, 14 [#allocation9]
        %360 = vst [vmem:[%s359] sm:$0x3] %v358
        %v361 = vmul.f32 %v328, %v262
        %v362 = vmul.f32 %v338, %v264
        %v363 = vadd.f32 %v361, %v362
        %v364 = vmul.f32 %v348, %v267
        %v365 = vadd.f32 %v363, %v364
        %v366 = vmul.f32 %v358, %v270
        %v367 = vadd.f32 %v365, %v366
        %v368 = vadd.f32 %v367, %v273
        %s369 = scalar_lea.vmem %s234, 16 [#allocation9]
        %370 = vst [vmem:[%s369] sm:$0x3] %v368
        %v371 = vmul.f32 %v328, %v276
        %v372 = vmul.f32 %v338, %v278
        %v373 = vadd.f32 %v371, %v372
        %v374 = vmul.f32 %v348, %v281
        %v375 = vadd.f32 %v373, %v374
        %v376 = vmul.f32 %v358, %v284
        %v377 = vadd.f32 %v375, %v376
        %v378 = vadd.f32 %v377, %v287
        %s379 = scalar_lea.vmem %s234, 18 [#allocation9]
        %380 = vst [vmem:[%s379] sm:$0x3] %v378
        %v381 = vmul.f32 %v328, %v291
        %v382 = vmul.f32 %v338, %v293
        %v383 = vadd.f32 %v381, %v382
        %v384 = vmul.f32 %v348, %v296
        %v385 = vadd.f32 %v383, %v384
        %v386 = vmul.f32 %v358, %v299
        %v387 = vadd.f32 %v385, %v386
        %v388 = vadd.f32 %v387, %v302
        %s389 = scalar_lea.vmem %s234, 20 [#allocation9]
        %390 = vst [vmem:[%s389] sm:$0x3] %v388
        %v391 = vmul.f32 %v328, %v306
        %v392 = vmul.f32 %v338, %v308
        %v393 = vadd.f32 %v391, %v392
        %v394 = vmul.f32 %v348, %v311
        %v395 = vadd.f32 %v393, %v394
        %v396 = vmul.f32 %v358, %v314
        %v397 = vadd.f32 %v395, %v396
        %v398 = vadd.f32 %v397, %v317
        %s399 = scalar_lea.vmem %s234, 22 [#allocation9]
        %400 = vst [vmem:[%s399] sm:$0x3] %v398
        %s401 = sand.u32 %s114, 1
        %s402 = scalar_lea.sflag [#allocation4], %s401
        %s403 = sand.u32 %s114, 1
        %s404 = smul.addr %s403, 24
        %s405 = scalar_lea.vmem [#allocation9], %s404
        // Predicated region
        $region45: #{tpu_custom_call.1} parent=31 // pred_check
          %p406 = pneg %p124
        $region46: #{tpu_custom_call.1} parent=31 // pred_check_branch
          %408 = sbr.rel (%p406) target = $region48
        $region47: #{tpu_custom_call.1} parent=31 // pred_region
          %410 = vsyncadd %s402, 0
          %s411 = smul.addr %s26, 12
          %s412 = sadd.s32 %s27, %s411
          %s413 = smul.addr %s412, 2
          %s414 = scalar_lea.hbm %s3, %s413
          %s415 = sshll.u32 %s405, 4
          %s416 = int_to_ptr.vmem [resolvable:$true] %s415
          %s417 = sshll.u32 %s414, 4
          %s418 = int_to_ptr.hbm [resolvable:$true] %s417
          %423 = dma.vmem_to_hbm [thread:$0]  %s416, 384, %s418, %s402, 32, 32, 2
        $region48: #{tpu_custom_call.1} parent=31 // pred_fallthru
          _
      $region32: #{tpu_custom_call.1} parent=5 // pred_fallthru
        _
      %p424 = scmp.le.s32.totalorder 2, %s17
      // Predicated region
      $region49: #{tpu_custom_call.1} parent=5 // pred_check
        %p425 = pneg %p424
      $region50: #{tpu_custom_call.1} parent=5 // pred_check_branch
        %427 = sbr.rel (%p425) target = $region52
      $region51: #{tpu_custom_call.1} parent=5 // pred_region
        %s428 = ssub.s32 %s17, 2
        // Predicated region
        $region53: #{tpu_custom_call.1} parent=51 // pred_check
          %p429 = pneg %p130
        $region54: #{tpu_custom_call.1} parent=51 // pred_check_branch
          %431 = sbr.rel (%p429) target = $region56
        $region55: #{tpu_custom_call.1} parent=51 // pred_region
          %s432 = sand.u32 %s115, 1
          %s433 = scalar_lea.sflag [#allocation4], %s432
          %s434 = sand.u32 %s115, 1
          %s435 = smul.addr %s434, 24
          %s436 = scalar_lea.vmem [#allocation9], %s435
          %438 = dma.done %s433, 384
        $region56: #{tpu_custom_call.1} parent=51 // pred_fallthru
          _
      $region52: #{tpu_custom_call.1} parent=5 // pred_fallthru
        _
    $region6: #{tpu_custom_call.1} parent=1 // loop_footer
      %s21 = sadd.s32 1, %s17
    $region7: #{tpu_custom_call.1} parent=1 // loop_footer_branch
      %16 = sbr.rel target = $region3
    $region8: #{tpu_custom_call.1} parent=1 // loop_exit
      _
    %439 = vsyncpa [#allocation3], 1
    %s440 = scalar_lea.sflag [#allocation3], 1
    %441 = vsyncpa %s440, 1
    %442 = vsyncpa [#allocation4], 1
    %s443 = scalar_lea.sflag [#allocation4], 1
    %444 = vsyncpa %s443, 1
    %445 = vsyncpa [#allocation5], 1
    %s446 = scalar_lea.sflag [#allocation5], 1
    %447 = vsyncpa %s446, 1
    %448 = vsyncpa [#allocation6], 1
    %s449 = scalar_lea.sflag [#allocation6], 1
    %450 = vsyncpa %s449, 1

</llo_original>
